<compile_context>
chip_gen: v6e
topology: v6e:2x2x1
jax: 0.10.0
libtpu: 0.0.40
codegen_flags: <defaults>
</compile_context>

<pallas_src>
import functools
import math

import jax
import jax.numpy as jnp
from jax import lax
from jax.experimental import pallas as pl
from jax.experimental.pallas import tpu as pltpu

LN_EPS = 1e-5
NEG_SLOPE = 0.2
LANE = 128        # lane width: pad every feature dim to a multiple of this
ROW_ALIGN = 16    # row (sublane) alignment; 16 is safe for bf16 and f32 tiles
VMEM_LIMIT_BYTES = 64 * 1024 * 1024


def _round_up(x, m):
    return ((x + m - 1) // m) * m


def _pad2(a, rows, cols):
    r, c = a.shape
    return jnp.pad(a, ((0, rows - r), (0, cols - c)))


def _fused_mlp_kernel(*refs, cfgs):
    """refs = [x_ref, (w, b, gamma, beta) * n_layers ..., out_ref].

    cfgs: tuple of (use_norm, use_act, act_name, true_out_dim) per layer
    (static Python values -> the layer loop is unrolled at trace time).
    """
    x_ref = refs[0]
    out_ref = refs[-1]
    param_refs = refs[1:-1]
    compute_dtype = x_ref.dtype            # bf16 feed into the MXU

    h = x_ref[...]                         # (bm, D0_pad) bf16, resident in VMEM
    n_layers = len(cfgs)
    for li, (use_norm, use_act, act_name, d_true) in enumerate(cfgs):
        w_ref, b_ref, g_ref, be_ref = param_refs[4 * li: 4 * li + 4]

        # Linear: bf16 x bf16 MXU matmul with f32 accumulation, then f32 bias.
        y = jnp.dot(h, w_ref[...], preferred_element_type=jnp.float32)
        y = y + b_ref[...]                 # bias kept: not a no-op under LayerNorm

        if use_norm:
            # One-pass stats: padded columns of y are exact zeros, so summing
            # over the padded width and dividing by the TRUE width is exact.
            inv_d = 1.0 / d_true
            s1 = jnp.sum(y, axis=-1, keepdims=True)
            s2 = jnp.sum(y * y, axis=-1, keepdims=True)
            mean = s1 * inv_d
            var = jnp.maximum(s2 * inv_d - mean * mean, 0.0)
            y = (y - mean) * lax.rsqrt(var + LN_EPS)
            # gamma/beta are zero in the padded region -> padded cols stay 0.
            y = y * g_ref[...] + be_ref[...]

        if use_act:
            if act_name == 'relu':
                y = jnp.maximum(y, 0.0)
            else:  # leaky_relu, negative_slope = 0.2
                y = jnp.where(y >= 0, y, NEG_SLOPE * y)

        if li < n_layers - 1:
            h = y.astype(compute_dtype)    # bf16 feed to the next MXU matmul
        else:
            out_ref[...] = y.astype(out_ref.dtype)


class MLPPallas:
    """Mirror of the PyTorch MLP module."""

    def __init__(self, key, in_dim, out_dim, hidden_dims=(), norm=True,
                 final_norm=True, act='leaky_relu', final_act=True,
                 param_dtype=jnp.bfloat16):
        assert act in ('relu', 'leaky_relu')
        self.norm = norm
        self.final_norm = final_norm
        self.act = act
        self.final_act = final_act
        self.in_dim = in_dim
        self.out_dim = out_dim

        dims = [in_dim] + list(hidden_dims) + [out_dim]
        self.dims = dims
        self.pdims = [_round_up(d, LANE) for d in dims]   # lane-padded widths

        n_layers = len(dims) - 1
        self.params = []       # padded params: (W^T bf16, bias f32, gamma f32, beta f32)
        self.layer_cfgs = []   # static per-layer config for the kernel
        for li in range(n_layers):
            d_in, d_out = dims[li], dims[li + 1]
            p_in, p_out = self.pdims[li], self.pdims[li + 1]
            key, kw, kb = jax.random.split(key, 3)
            # nn.Linear default init: U(-1/sqrt(fan_in), 1/sqrt(fan_in))
            bound = 1.0 / math.sqrt(d_in)
            w = jax.random.uniform(kw, (d_out, d_in), jnp.float32, -bound, bound)
            b = jax.random.uniform(kb, (d_out,), jnp.float32, -bound, bound)
            gamma = jnp.ones((d_out,), jnp.float32)   # LayerNorm default init
            beta = jnp.zeros((d_out,), jnp.float32)

            w_t = _pad2(w.T, p_in, p_out).astype(param_dtype)     # (in_pad, out_pad) bf16
            b_p = _pad2(b[None, :], 1, p_out)                     # (1, out_pad) f32
            g_p = _pad2(gamma[None, :], 1, p_out)
            be_p = _pad2(beta[None, :], 1, p_out)
            self.params.append((w_t, b_p, g_p, be_p))

            is_last = li == n_layers - 1
            use_norm = self.norm if not is_last else (self.norm and self.final_norm)
            use_act = True if not is_last else self.final_act
            self.layer_cfgs.append((use_norm, use_act, act, d_out))

    def __call__(self, x, block_rows=512):
        orig_shape = x.shape
        x2 = x.reshape(-1, orig_shape[-1])
        assert x2.shape[-1] == self.in_dim
        n = x2.shape[0]

        d0p = self.pdims[0]
        dlp = self.pdims[-1]
        n_pad = max(_round_up(n, ROW_ALIGN), ROW_ALIGN)
        xp = jnp.pad(x2.astype(jnp.bfloat16),
                     ((0, n_pad - n), (0, d0p - self.in_dim)))

        # Row tile: as large as possible (amortize ~0.35us/step), but capped at
        # ~n/2 so the "parallel" row axis can use both v7x TensorCores.
        bm = min(block_rows, max(ROW_ALIGN, _round_up(pl.cdiv(n_pad, 2), ROW_ALIGN)))
        bm = min(bm, n_pad)
        grid_rows = pl.cdiv(n_pad, bm)

        in_specs = [pl.BlockSpec((bm, d0p), lambda i: (i, 0))]    # activation row tile
        flat_inputs = [xp]
        for (w_t, b_p, g_p, be_p) in self.params:
            p_in, p_out = w_t.shape
            in_specs += [
                pl.BlockSpec((p_in, p_out), lambda i: (0, 0)),    # weights (resident)
                pl.BlockSpec((1, p_out), lambda i: (0, 0)),       # bias
                pl.BlockSpec((1, p_out), lambda i: (0, 0)),       # ln gamma
                pl.BlockSpec((1, p_out), lambda i: (0, 0)),       # ln beta
            ]
            flat_inputs += [w_t, b_p, g_p, be_p]
        out_spec = pl.BlockSpec((bm, dlp), lambda i: (i, 0))

        flops = 2 * n_pad * sum(a * b for a, b in zip(self.pdims[:-1], self.pdims[1:]))
        bytes_accessed = (
            xp.size * 2
            + sum(w.size * 2 + (b.size + g.size + be.size) * 4
                  for (w, b, g, be) in self.params)
            + n_pad * dlp * 4)
        transcendentals = n_pad * sum(1 for c in self.layer_cfgs if c[0])

        kernel = functools.partial(_fused_mlp_kernel, cfgs=tuple(self.layer_cfgs))

        out = pl.pallas_call(
            kernel,
            out_shape=jax.ShapeDtypeStruct((n_pad, dlp), jnp.float32),
            grid_spec=pltpu.PrefetchScalarGridSpec(
                num_scalar_prefetch=0,
                grid=(grid_rows,),
                in_specs=in_specs,
                out_specs=out_spec,
            ),
            compiler_params=pltpu.CompilerParams(
                dimension_semantics=("parallel",),
                vmem_limit_bytes=VMEM_LIMIT_BYTES,
            ),
            cost_estimate=pl.CostEstimate(
                flops=flops,
                transcendentals=transcendentals,
                bytes_accessed=bytes_accessed,
            ),
        )(*flat_inputs)

        out = out[:n, :self.out_dim]
        return out.reshape(*orig_shape[:-1], self.out_dim)


if __name__ == "__main__":
    key = jax.random.PRNGKey(0)
    k_params, k_x = jax.random.split(key)

    batch, in_dim, out_dim = 8, 32, 16
    hidden_dims = [64, 64]

    mlp = MLPPallas(k_params, in_dim, out_dim, hidden_dims=hidden_dims,
                    norm=True, final_norm=True, act='leaky_relu', final_act=True)

    x = jax.random.normal(k_x, (batch, in_dim), jnp.float32)

    y = mlp(x)
    jax.block_until_ready(y)

    # Pure-JAX reference on the UNPADDED params, reproducing the kernel's
    # numerics (bf16 weights/activations into the matmul, f32 accumulation,
    # classic two-pass LayerNorm) to validate the fused/padded kernel.
    def ref_forward(xin):
        h = xin.reshape(-1, in_dim).astype(jnp.float32)
        for li, ((w_t, b_p, g_p, be_p), cfg) in enumerate(zip(mlp.params, mlp.layer_cfgs)):
            use_norm, use_act, act_name, d_out = cfg
            d_in = mlp.dims[li]
            w = w_t[:d_in, :d_out]          # bf16 true region
            b = b_p[0, :d_out]
            g = g_p[0, :d_out]
            be = be_p[0, :d_out]
            y_ = jnp.dot(h.astype(jnp.bfloat16), w,
                         preferred_element_type=jnp.float32) + b
            if use_norm:
                mu = jnp.mean(y_, axis=-1, keepdims=True)
                var = jnp.mean((y_ - mu) ** 2, axis=-1, keepdims=True)
                y_ = (y_ - mu) * lax.rsqrt(var + LN_EPS) * g + be
            if use_act:
                if act_name == 'relu':
                    y_ = jnp.maximum(y_, 0.0)
                else:
                    y_ = jnp.where(y_ >= 0, y_, NEG_SLOPE * y_)
            h = y_
        return h

    y_ref = ref_forward(x)
    assert y.shape == (batch, out_dim)
    assert jnp.allclose(y, y_ref, atol=1e-2, rtol=1e-2), (
        float(jnp.max(jnp.abs(y - y_ref))))

    print("KERNEL_OK")
</pallas_src>

<mosaic_0001>
module attributes {stable_mosaic.version = 11 : i64} {
  func.func @_fused_mlp_kernel(%arg0: i32, %arg1: memref<16x128xbf16, #tpu.memory_space<vmem>>, %arg2: memref<128x128xbf16, #tpu.memory_space<vmem>>, %arg3: memref<1x128xf32, #tpu.memory_space<vmem>>, %arg4: memref<1x128xf32, #tpu.memory_space<vmem>>, %arg5: memref<1x128xf32, #tpu.memory_space<vmem>>, %arg6: memref<128x128xbf16, #tpu.memory_space<vmem>>, %arg7: memref<1x128xf32, #tpu.memory_space<vmem>>, %arg8: memref<1x128xf32, #tpu.memory_space<vmem>>, %arg9: memref<1x128xf32, #tpu.memory_space<vmem>>, %arg10: memref<128x128xbf16, #tpu.memory_space<vmem>>, %arg11: memref<1x128xf32, #tpu.memory_space<vmem>>, %arg12: memref<1x128xf32, #tpu.memory_space<vmem>>, %arg13: memref<1x128xf32, #tpu.memory_space<vmem>>, %arg14: memref<16x128xf32, #tpu.memory_space<vmem>>) attributes {dimension_semantics = [#tpu.dimension_semantics<parallel>], iteration_bounds = array<i64: 1>, scalar_prefetch = 0 : i64, scratch_operands = 0 : i64, tpu.core_type = #tpu.core_type<tc>, window_params = [{transform_indices = @transform_0, window_bounds = array<i64: 16, 128>}, {pipeline_mode = #tpu.pipeline_mode<synchronous>, transform_indices = @transform_1, window_bounds = array<i64: 128, 128>}, {pipeline_mode = #tpu.pipeline_mode<synchronous>, transform_indices = @transform_2, window_bounds = array<i64: 1, 128>}, {pipeline_mode = #tpu.pipeline_mode<synchronous>, transform_indices = @transform_3, window_bounds = array<i64: 1, 128>}, {pipeline_mode = #tpu.pipeline_mode<synchronous>, transform_indices = @transform_4, window_bounds = array<i64: 1, 128>}, {pipeline_mode = #tpu.pipeline_mode<synchronous>, transform_indices = @transform_5, window_bounds = array<i64: 128, 128>}, {pipeline_mode = #tpu.pipeline_mode<synchronous>, transform_indices = @transform_6, window_bounds = array<i64: 1, 128>}, {pipeline_mode = #tpu.pipeline_mode<synchronous>, transform_indices = @transform_7, window_bounds = array<i64: 1, 128>}, {pipeline_mode = #tpu.pipeline_mode<synchronous>, transform_indices = @transform_8, window_bounds = array<i64: 1, 128>}, {pipeline_mode = #tpu.pipeline_mode<synchronous>, transform_indices = @transform_9, window_bounds = array<i64: 128, 128>}, {pipeline_mode = #tpu.pipeline_mode<synchronous>, transform_indices = @transform_10, window_bounds = array<i64: 1, 128>}, {pipeline_mode = #tpu.pipeline_mode<synchronous>, transform_indices = @transform_11, window_bounds = array<i64: 1, 128>}, {pipeline_mode = #tpu.pipeline_mode<synchronous>, transform_indices = @transform_12, window_bounds = array<i64: 1, 128>}, {transform_indices = @transform_13, window_bounds = array<i64: 16, 128>}]} {
    %c0 = arith.constant 0 : index
    %c0_0 = arith.constant 0 : index
    %0 = vector.load %arg1[%c0, %c0_0] : memref<16x128xbf16, #tpu.memory_space<vmem>>, vector<16x128xbf16>
    %c0_1 = arith.constant 0 : index
    %c0_2 = arith.constant 0 : index
    %1 = vector.load %arg2[%c0_1, %c0_2] : memref<128x128xbf16, #tpu.memory_space<vmem>>, vector<128x128xbf16>
    %cst = arith.constant dense<0.000000e+00> : vector<16x128xf32>
    %2 = tpu.matmul %0, %1, %cst {dimension_numbers = #tpu.dot_dimension_numbers<[1], [0], [0], [1], [0, 0, 1, 1], [], []>} : vector<16x128xbf16>, vector<128x128xbf16>, vector<16x128xf32> -> vector<16x128xf32>
    %c0_3 = arith.constant 0 : index
    %c0_4 = arith.constant 0 : index
    %3 = vector.load %arg3[%c0_3, %c0_4] : memref<1x128xf32, #tpu.memory_space<vmem>>, vector<1x128xf32>
    %4 = vector.broadcast %3 : vector<1x128xf32> to vector<16x128xf32>
    %5 = arith.addf %2, %4 : vector<16x128xf32>
    %cst_5 = arith.constant dense<0.000000e+00> : vector<16xf32>
    %6 = vector.multi_reduction <add>, %5, %cst_5 [1] : vector<16x128xf32> to vector<16xf32>
    %7 = vector.shape_cast %6 : vector<16xf32> to vector<16x1xf32>
    %8 = arith.mulf %5, %5 : vector<16x128xf32>
    %cst_6 = arith.constant dense<0.000000e+00> : vector<16xf32>
    %9 = vector.multi_reduction <add>, %8, %cst_6 [1] : vector<16x128xf32> to vector<16xf32>
    %10 = vector.shape_cast %9 : vector<16xf32> to vector<16x1xf32>
    %cst_7 = arith.constant 1.562500e-02 : f32
    %11 = vector.broadcast %cst_7 : f32 to vector<16x1xf32>
    %12 = arith.mulf %7, %11 : vector<16x1xf32>
    %cst_8 = arith.constant 1.562500e-02 : f32
    %13 = vector.broadcast %cst_8 : f32 to vector<16x1xf32>
    %14 = arith.mulf %10, %13 : vector<16x1xf32>
    %15 = arith.mulf %12, %12 : vector<16x1xf32>
    %16 = arith.subf %14, %15 : vector<16x1xf32>
    %cst_9 = arith.constant 0.000000e+00 : f32
    %17 = vector.broadcast %cst_9 : f32 to vector<16x1xf32>
    %18 = arith.maximumf %16, %17 : vector<16x1xf32>
    %19 = vector.broadcast %12 : vector<16x1xf32> to vector<16x128xf32>
    %20 = arith.subf %5, %19 : vector<16x128xf32>
    %cst_10 = arith.constant 9.99999974E-6 : f32
    %21 = vector.broadcast %cst_10 : f32 to vector<16x1xf32>
    %22 = arith.addf %18, %21 : vector<16x1xf32>
    %23 = math.rsqrt %22 : vector<16x1xf32>
    %24 = vector.broadcast %23 : vector<16x1xf32> to vector<16x128xf32>
    %25 = arith.mulf %20, %24 : vector<16x128xf32>
    %c0_11 = arith.constant 0 : index
    %c0_12 = arith.constant 0 : index
    %26 = vector.load %arg4[%c0_11, %c0_12] : memref<1x128xf32, #tpu.memory_space<vmem>>, vector<1x128xf32>
    %27 = vector.broadcast %26 : vector<1x128xf32> to vector<16x128xf32>
    %28 = arith.mulf %25, %27 : vector<16x128xf32>
    %c0_13 = arith.constant 0 : index
    %c0_14 = arith.constant 0 : index
    %29 = vector.load %arg5[%c0_13, %c0_14] : memref<1x128xf32, #tpu.memory_space<vmem>>, vector<1x128xf32>
    %30 = vector.broadcast %29 : vector<1x128xf32> to vector<16x128xf32>
    %31 = arith.addf %28, %30 : vector<16x128xf32>
    %cst_15 = arith.constant 0.000000e+00 : f32
    %32 = vector.broadcast %cst_15 : f32 to vector<16x128xf32>
    %33 = arith.cmpf oge, %31, %32 : vector<16x128xf32>
    %cst_16 = arith.constant 2.000000e-01 : f32
    %34 = vector.broadcast %cst_16 : f32 to vector<16x128xf32>
    %35 = arith.mulf %34, %31 : vector<16x128xf32>
    %36 = arith.select %33, %31, %35 : vector<16x128xi1>, vector<16x128xf32>
    %37 = arith.truncf %36 : vector<16x128xf32> to vector<16x128xbf16>
    %c0_17 = arith.constant 0 : index
    %c0_18 = arith.constant 0 : index
    %38 = vector.load %arg6[%c0_17, %c0_18] : memref<128x128xbf16, #tpu.memory_space<vmem>>, vector<128x128xbf16>
    %cst_19 = arith.constant dense<0.000000e+00> : vector<16x128xf32>
    %39 = tpu.matmul %37, %38, %cst_19 {dimension_numbers = #tpu.dot_dimension_numbers<[1], [0], [0], [1], [0, 0, 1, 1], [], []>} : vector<16x128xbf16>, vector<128x128xbf16>, vector<16x128xf32> -> vector<16x128xf32>
    %c0_20 = arith.constant 0 : index
    %c0_21 = arith.constant 0 : index
    %40 = vector.load %arg7[%c0_20, %c0_21] : memref<1x128xf32, #tpu.memory_space<vmem>>, vector<1x128xf32>
    %41 = vector.broadcast %40 : vector<1x128xf32> to vector<16x128xf32>
    %42 = arith.addf %39, %41 : vector<16x128xf32>
    %cst_22 = arith.constant dense<0.000000e+00> : vector<16xf32>
    %43 = vector.multi_reduction <add>, %42, %cst_22 [1] : vector<16x128xf32> to vector<16xf32>
    %44 = vector.shape_cast %43 : vector<16xf32> to vector<16x1xf32>
    %45 = arith.mulf %42, %42 : vector<16x128xf32>
    %cst_23 = arith.constant dense<0.000000e+00> : vector<16xf32>
    %46 = vector.multi_reduction <add>, %45, %cst_23 [1] : vector<16x128xf32> to vector<16xf32>
    %47 = vector.shape_cast %46 : vector<16xf32> to vector<16x1xf32>
    %cst_24 = arith.constant 1.562500e-02 : f32
    %48 = vector.broadcast %cst_24 : f32 to vector<16x1xf32>
    %49 = arith.mulf %44, %48 : vector<16x1xf32>
    %cst_25 = arith.constant 1.562500e-02 : f32
    %50 = vector.broadcast %cst_25 : f32 to vector<16x1xf32>
    %51 = arith.mulf %47, %50 : vector<16x1xf32>
    %52 = arith.mulf %49, %49 : vector<16x1xf32>
    %53 = arith.subf %51, %52 : vector<16x1xf32>
    %cst_26 = arith.constant 0.000000e+00 : f32
    %54 = vector.broadcast %cst_26 : f32 to vector<16x1xf32>
    %55 = arith.maximumf %53, %54 : vector<16x1xf32>
    %56 = vector.broadcast %49 : vector<16x1xf32> to vector<16x128xf32>
    %57 = arith.subf %42, %56 : vector<16x128xf32>
    %cst_27 = arith.constant 9.99999974E-6 : f32
    %58 = vector.broadcast %cst_27 : f32 to vector<16x1xf32>
    %59 = arith.addf %55, %58 : vector<16x1xf32>
    %60 = math.rsqrt %59 : vector<16x1xf32>
    %61 = vector.broadcast %60 : vector<16x1xf32> to vector<16x128xf32>
    %62 = arith.mulf %57, %61 : vector<16x128xf32>
    %c0_28 = arith.constant 0 : index
    %c0_29 = arith.constant 0 : index
    %63 = vector.load %arg8[%c0_28, %c0_29] : memref<1x128xf32, #tpu.memory_space<vmem>>, vector<1x128xf32>
    %64 = vector.broadcast %63 : vector<1x128xf32> to vector<16x128xf32>
    %65 = arith.mulf %62, %64 : vector<16x128xf32>
    %c0_30 = arith.constant 0 : index
    %c0_31 = arith.constant 0 : index
    %66 = vector.load %arg9[%c0_30, %c0_31] : memref<1x128xf32, #tpu.memory_space<vmem>>, vector<1x128xf32>
    %67 = vector.broadcast %66 : vector<1x128xf32> to vector<16x128xf32>
    %68 = arith.addf %65, %67 : vector<16x128xf32>
    %cst_32 = arith.constant 0.000000e+00 : f32
    %69 = vector.broadcast %cst_32 : f32 to vector<16x128xf32>
    %70 = arith.cmpf oge, %68, %69 : vector<16x128xf32>
    %cst_33 = arith.constant 2.000000e-01 : f32
    %71 = vector.broadcast %cst_33 : f32 to vector<16x128xf32>
    %72 = arith.mulf %71, %68 : vector<16x128xf32>
    %73 = arith.select %70, %68, %72 : vector<16x128xi1>, vector<16x128xf32>
    %74 = arith.truncf %73 : vector<16x128xf32> to vector<16x128xbf16>
    %c0_34 = arith.constant 0 : index
    %c0_35 = arith.constant 0 : index
    %75 = vector.load %arg10[%c0_34, %c0_35] : memref<128x128xbf16, #tpu.memory_space<vmem>>, vector<128x128xbf16>
    %cst_36 = arith.constant dense<0.000000e+00> : vector<16x128xf32>
    %76 = tpu.matmul %74, %75, %cst_36 {dimension_numbers = #tpu.dot_dimension_numbers<[1], [0], [0], [1], [0, 0, 1, 1], [], []>} : vector<16x128xbf16>, vector<128x128xbf16>, vector<16x128xf32> -> vector<16x128xf32>
    %c0_37 = arith.constant 0 : index
    %c0_38 = arith.constant 0 : index
    %77 = vector.load %arg11[%c0_37, %c0_38] : memref<1x128xf32, #tpu.memory_space<vmem>>, vector<1x128xf32>
    %78 = vector.broadcast %77 : vector<1x128xf32> to vector<16x128xf32>
    %79 = arith.addf %76, %78 : vector<16x128xf32>
    %cst_39 = arith.constant dense<0.000000e+00> : vector<16xf32>
    %80 = vector.multi_reduction <add>, %79, %cst_39 [1] : vector<16x128xf32> to vector<16xf32>
    %81 = vector.shape_cast %80 : vector<16xf32> to vector<16x1xf32>
    %82 = arith.mulf %79, %79 : vector<16x128xf32>
    %cst_40 = arith.constant dense<0.000000e+00> : vector<16xf32>
    %83 = vector.multi_reduction <add>, %82, %cst_40 [1] : vector<16x128xf32> to vector<16xf32>
    %84 = vector.shape_cast %83 : vector<16xf32> to vector<16x1xf32>
    %cst_41 = arith.constant 6.250000e-02 : f32
    %85 = vector.broadcast %cst_41 : f32 to vector<16x1xf32>
    %86 = arith.mulf %81, %85 : vector<16x1xf32>
    %cst_42 = arith.constant 6.250000e-02 : f32
    %87 = vector.broadcast %cst_42 : f32 to vector<16x1xf32>
    %88 = arith.mulf %84, %87 : vector<16x1xf32>
    %89 = arith.mulf %86, %86 : vector<16x1xf32>
    %90 = arith.subf %88, %89 : vector<16x1xf32>
    %cst_43 = arith.constant 0.000000e+00 : f32
    %91 = vector.broadcast %cst_43 : f32 to vector<16x1xf32>
    %92 = arith.maximumf %90, %91 : vector<16x1xf32>
    %93 = vector.broadcast %86 : vector<16x1xf32> to vector<16x128xf32>
    %94 = arith.subf %79, %93 : vector<16x128xf32>
    %cst_44 = arith.constant 9.99999974E-6 : f32
    %95 = vector.broadcast %cst_44 : f32 to vector<16x1xf32>
    %96 = arith.addf %92, %95 : vector<16x1xf32>
    %97 = math.rsqrt %96 : vector<16x1xf32>
    %98 = vector.broadcast %97 : vector<16x1xf32> to vector<16x128xf32>
    %99 = arith.mulf %94, %98 : vector<16x128xf32>
    %c0_45 = arith.constant 0 : index
    %c0_46 = arith.constant 0 : index
    %100 = vector.load %arg12[%c0_45, %c0_46] : memref<1x128xf32, #tpu.memory_space<vmem>>, vector<1x128xf32>
    %101 = vector.broadcast %100 : vector<1x128xf32> to vector<16x128xf32>
    %102 = arith.mulf %99, %101 : vector<16x128xf32>
    %c0_47 = arith.constant 0 : index
    %c0_48 = arith.constant 0 : index
    %103 = vector.load %arg13[%c0_47, %c0_48] : memref<1x128xf32, #tpu.memory_space<vmem>>, vector<1x128xf32>
    %104 = vector.broadcast %103 : vector<1x128xf32> to vector<16x128xf32>
    %105 = arith.addf %102, %104 : vector<16x128xf32>
    %cst_49 = arith.constant 0.000000e+00 : f32
    %106 = vector.broadcast %cst_49 : f32 to vector<16x128xf32>
    %107 = arith.cmpf oge, %105, %106 : vector<16x128xf32>
    %cst_50 = arith.constant 2.000000e-01 : f32
    %108 = vector.broadcast %cst_50 : f32 to vector<16x128xf32>
    %109 = arith.mulf %108, %105 : vector<16x128xf32>
    %110 = arith.select %107, %105, %109 : vector<16x128xi1>, vector<16x128xf32>
    %c0_51 = arith.constant 0 : index
    %c0_52 = arith.constant 0 : index
    %111 = vector.load %arg14[%c0_51, %c0_52] : memref<16x128xf32, #tpu.memory_space<vmem>>, vector<16x128xf32>
    tpu.vector_store %arg14[%c0_51, %c0_52], %110 {strides = array<i32>} : memref<16x128xf32, #tpu.memory_space<vmem>>, vector<16x128xf32>,
    return
  }
  func.func @transform_0(%arg0: i32) -> (i32, i32) {
    %c0_i32 = arith.constant 0 : i32
    %c0_i32_0 = arith.constant 0 : i32
    return %arg0, %c0_i32 : i32, i32
  }
  func.func @transform_1(%arg0: i32) -> (i32, i32) {
    %c0_i32 = arith.constant 0 : i32
    %c0_i32_0 = arith.constant 0 : i32
    %c0_i32_1 = arith.constant 0 : i32
    return %c0_i32, %c0_i32_0 : i32, i32
  }
  func.func @transform_2(%arg0: i32) -> (i32, i32) {
    %c0_i32 = arith.constant 0 : i32
    %c0_i32_0 = arith.constant 0 : i32
    %c0_i32_1 = arith.constant 0 : i32
    return %c0_i32, %c0_i32_0 : i32, i32
  }
  func.func @transform_3(%arg0: i32) -> (i32, i32) {
    %c0_i32 = arith.constant 0 : i32
    %c0_i32_0 = arith.constant 0 : i32
    %c0_i32_1 = arith.constant 0 : i32
    return %c0_i32, %c0_i32_0 : i32, i32
  }
  func.func @transform_4(%arg0: i32) -> (i32, i32) {
    %c0_i32 = arith.constant 0 : i32
    %c0_i32_0 = arith.constant 0 : i32
    %c0_i32_1 = arith.constant 0 : i32
    return %c0_i32, %c0_i32_0 : i32, i32
  }
  func.func @transform_5(%arg0: i32) -> (i32, i32) {
    %c0_i32 = arith.constant 0 : i32
    %c0_i32_0 = arith.constant 0 : i32
    %c0_i32_1 = arith.constant 0 : i32
    return %c0_i32, %c0_i32_0 : i32, i32
  }
  func.func @transform_6(%arg0: i32) -> (i32, i32) {
    %c0_i32 = arith.constant 0 : i32
    %c0_i32_0 = arith.constant 0 : i32
    %c0_i32_1 = arith.constant 0 : i32
    return %c0_i32, %c0_i32_0 : i32, i32
  }
  func.func @transform_7(%arg0: i32) -> (i32, i32) {
    %c0_i32 = arith.constant 0 : i32
    %c0_i32_0 = arith.constant 0 : i32
    %c0_i32_1 = arith.constant 0 : i32
    return %c0_i32, %c0_i32_0 : i32, i32
  }
  func.func @transform_8(%arg0: i32) -> (i32, i32) {
    %c0_i32 = arith.constant 0 : i32
    %c0_i32_0 = arith.constant 0 : i32
    %c0_i32_1 = arith.constant 0 : i32
    return %c0_i32, %c0_i32_0 : i32, i32
  }
  func.func @transform_9(%arg0: i32) -> (i32, i32) {
    %c0_i32 = arith.constant 0 : i32
    %c0_i32_0 = arith.constant 0 : i32
    %c0_i32_1 = arith.constant 0 : i32
    return %c0_i32, %c0_i32_0 : i32, i32
  }
  func.func @transform_10(%arg0: i32) -> (i32, i32) {
    %c0_i32 = arith.constant 0 : i32
    %c0_i32_0 = arith.constant 0 : i32
    %c0_i32_1 = arith.constant 0 : i32
    return %c0_i32, %c0_i32_0 : i32, i32
  }
  func.func @transform_11(%arg0: i32) -> (i32, i32) {
    %c0_i32 = arith.constant 0 : i32
    %c0_i32_0 = arith.constant 0 : i32
    %c0_i32_1 = arith.constant 0 : i32
    return %c0_i32, %c0_i32_0 : i32, i32
  }
  func.func @transform_12(%arg0: i32) -> (i32, i32) {
    %c0_i32 = arith.constant 0 : i32
    %c0_i32_0 = arith.constant 0 : i32
    %c0_i32_1 = arith.constant 0 : i32
    return %c0_i32, %c0_i32_0 : i32, i32
  }
  func.func @transform_13(%arg0: i32) -> (i32, i32) {
    %c0_i32 = arith.constant 0 : i32
    %c0_i32_0 = arith.constant 0 : i32
    return %arg0, %c0_i32 : i32, i32
  }
}

</mosaic_0001>

<llo_original>
// kernel: tpu_custom_call.1
$region0: #{tpu_custom_call.1}
  #allocation0 [shape = 'u32[]', space=smem, size = 0x4, offset = 0x4, fixed_abs, tag = 'smem constant byte address 0x4 - core index']
  #allocation1 [shape = 'u32[144,128]{1,0:T(1,128)}', space=vmem, size = 0x12000, scoped, tag = 'internal scratch']
  %s0 = inlined_call_operand.hbm [shape: bf16[16,128], index: 0, kind: input, shape index: {}]
  %s1 = inlined_call_operand.hbm [shape: bf16[128,128], index: 1, kind: input, shape index: {}]
  %s2 = inlined_call_operand.vmem [shape: f32[1,128], index: 2, kind: input, shape index: {}]
  %s3 = inlined_call_operand.vmem [shape: f32[1,128], index: 3, kind: input, shape index: {}]
  %s4 = inlined_call_operand.vmem [shape: f32[1,128], index: 4, kind: input, shape index: {}]
  %s5 = inlined_call_operand.hbm [shape: bf16[128,128], index: 5, kind: input, shape index: {}]
  %s6 = inlined_call_operand.vmem [shape: f32[1,128], index: 6, kind: input, shape index: {}]
  %s7 = inlined_call_operand.vmem [shape: f32[1,128], index: 7, kind: input, shape index: {}]
  %s8 = inlined_call_operand.vmem [shape: f32[1,128], index: 8, kind: input, shape index: {}]
  %s9 = inlined_call_operand.hbm [shape: bf16[128,128], index: 9, kind: input, shape index: {}]
  %s10 = inlined_call_operand.vmem [shape: f32[1,128], index: 10, kind: input, shape index: {}]
  %s11 = inlined_call_operand.vmem [shape: f32[1,128], index: 11, kind: input, shape index: {}]
  %s12 = inlined_call_operand.vmem [shape: f32[1,128], index: 12, kind: input, shape index: {}]
  %s13 = inlined_call_operand.hbm [shape: f32[16,128], index: 13, kind: output, shape index: {}]
  %s14 = sld [smem:[#allocation0]]
  $region78: #{tpu_custom_call.1} parent=0
    _
  %s16 = ssub.s32 1, %s14
  %s17 = scalar_select 0, %s16, %s14
  $region1: #{tpu_custom_call.1} parent=0
    #allocation2 [shape = 'u8[4096]{0}', space=vmem, size = 0x1000, scoped, tag = 'input window, operand 0, single buffered']
    #allocation3 [shape = 's32[1]{0}', space=sflag, size = 0x4, scoped, tag = 'scoped memory for tpu_custom_call.1']
    #allocation4 [shape = 's32[1]{0}', space=sflag, size = 0x4, scoped, tag = 'scoped memory for tpu_custom_call.1']
    #allocation5 [shape = 'u8[32768]{0}', space=vmem, size = 0x8000, scoped, tag = 'input window, operand 1, single buffered']
    #allocation6 [shape = 's32[1]{0}', space=sflag, size = 0x4, scoped, tag = 'scoped memory for tpu_custom_call.1']
    #allocation7 [shape = 'u8[32768]{0}', space=vmem, size = 0x8000, scoped, tag = 'input window, operand 5, single buffered']
    #allocation8 [shape = 'u8[32768]{0}', space=vmem, size = 0x8000, scoped, tag = 'input window, operand 9, single buffered']
    #allocation9 [shape = 's32[1]{0}', space=sflag, size = 0x4, scoped, tag = 'scoped memory for tpu_custom_call.1']
    #allocation10 [shape = 'u8[8192]{0}', space=vmem, size = 0x2000, scoped, tag = 'output window, operand 0, single buffered']
    %18 = vsyncpa [#allocation3], 0
    %19 = vsyncpa [#allocation6], 0
    %20 = vsyncpa [#allocation9], 0
    %21 = vsyncpa [#allocation4], 0
    // Predicated region
    $region2: #{tpu_custom_call.1} parent=1 // pred_check
      _
    $region3: #{tpu_custom_call.1} parent=1 // pred_check_branch
      %23 = sbr.rel (0) target = $region5
    $region4: #{tpu_custom_call.1} parent=1 // pred_region
      %s25 = ssub.s32 128, 128
      %26 = vsyncadd [#allocation3], %s25
      %s27 = sshll.u32 [#allocation2], 4
      %s28 = int_to_ptr.vmem [resolvable:$true] %s27
      %33 = dma.hbm_to_vmem [thread:$0]  %s0, 128, %s28, [#allocation3], 64, 64, 4
    $region5: #{tpu_custom_call.1} parent=1 // pred_fallthru
      _
    // Predicated region
    $region6: #{tpu_custom_call.1} parent=1 // pred_check
      _
    $region7: #{tpu_custom_call.1} parent=1 // pred_check_branch
      %35 = sbr.rel (0) target = $region9
    $region8: #{tpu_custom_call.1} parent=1 // pred_region
      %s37 = ssub.s32 1024, 1024
      %38 = vsyncadd [#allocation6], %s37
      %s39 = sshll.u32 [#allocation5], 4
      %s40 = int_to_ptr.vmem [resolvable:$true] %s39
      %45 = dma.hbm_to_vmem [thread:$0]  %s1, 1024, %s40, [#allocation6], 64, 64, 4
    $region9: #{tpu_custom_call.1} parent=1 // pred_fallthru
      _
    // Predicated region
    $region10: #{tpu_custom_call.1} parent=1 // pred_check
      _
    $region11: #{tpu_custom_call.1} parent=1 // pred_check_branch
      %47 = sbr.rel (0) target = $region13
    $region12: #{tpu_custom_call.1} parent=1 // pred_region
      _
    $region13: #{tpu_custom_call.1} parent=1 // pred_fallthru
      _
    // Predicated region
    $region14: #{tpu_custom_call.1} parent=1 // pred_check
      _
    $region15: #{tpu_custom_call.1} parent=1 // pred_check_branch
      %49 = sbr.rel (0) target = $region17
    $region16: #{tpu_custom_call.1} parent=1 // pred_region
      _
    $region17: #{tpu_custom_call.1} parent=1 // pred_fallthru
      _
    // Predicated region
    $region18: #{tpu_custom_call.1} parent=1 // pred_check
      _
    $region19: #{tpu_custom_call.1} parent=1 // pred_check_branch
      %51 = sbr.rel (0) target = $region21
    $region20: #{tpu_custom_call.1} parent=1 // pred_region
      _
    $region21: #{tpu_custom_call.1} parent=1 // pred_fallthru
      _
    // Predicated region
    $region22: #{tpu_custom_call.1} parent=1 // pred_check
      _
    $region23: #{tpu_custom_call.1} parent=1 // pred_check_branch
      %53 = sbr.rel (0) target = $region25
    $region24: #{tpu_custom_call.1} parent=1 // pred_region
      %s55 = ssub.s32 1024, 1024
      %56 = vsyncadd [#allocation6], %s55
      %s57 = sshll.u32 [#allocation7], 4
      %s58 = int_to_ptr.vmem [resolvable:$true] %s57
      %63 = dma.hbm_to_vmem [thread:$0]  %s5, 1024, %s58, [#allocation6], 64, 64, 4
    $region25: #{tpu_custom_call.1} parent=1 // pred_fallthru
      _
    // Predicated region
    $region26: #{tpu_custom_call.1} parent=1 // pred_check
      _
    $region27: #{tpu_custom_call.1} parent=1 // pred_check_branch
      %65 = sbr.rel (0) target = $region29
    $region28: #{tpu_custom_call.1} parent=1 // pred_region
      _
    $region29: #{tpu_custom_call.1} parent=1 // pred_fallthru
      _
    // Predicated region
    $region30: #{tpu_custom_call.1} parent=1 // pred_check
      _
    $region31: #{tpu_custom_call.1} parent=1 // pred_check_branch
      %67 = sbr.rel (0) target = $region33
    $region32: #{tpu_custom_call.1} parent=1 // pred_region
      _
    $region33: #{tpu_custom_call.1} parent=1 // pred_fallthru
      _
    // Predicated region
    $region34: #{tpu_custom_call.1} parent=1 // pred_check
      _
    $region35: #{tpu_custom_call.1} parent=1 // pred_check_branch
      %69 = sbr.rel (0) target = $region37
    $region36: #{tpu_custom_call.1} parent=1 // pred_region
      _
    $region37: #{tpu_custom_call.1} parent=1 // pred_fallthru
      _
    // Predicated region
    $region38: #{tpu_custom_call.1} parent=1 // pred_check
      _
    $region39: #{tpu_custom_call.1} parent=1 // pred_check_branch
      %71 = sbr.rel (0) target = $region41
    $region40: #{tpu_custom_call.1} parent=1 // pred_region
      %s73 = ssub.s32 1024, 1024
      %74 = vsyncadd [#allocation9], %s73
      %s75 = sshll.u32 [#allocation8], 4
      %s76 = int_to_ptr.vmem [resolvable:$true] %s75
      %81 = dma.hbm_to_vmem [thread:$0]  %s9, 1024, %s76, [#allocation9], 64, 64, 4
    $region41: #{tpu_custom_call.1} parent=1 // pred_fallthru
      _
    // Predicated region
    $region42: #{tpu_custom_call.1} parent=1 // pred_check
      _
    $region43: #{tpu_custom_call.1} parent=1 // pred_check_branch
      %83 = sbr.rel (0) target = $region45
    $region44: #{tpu_custom_call.1} parent=1 // pred_region
      _
    $region45: #{tpu_custom_call.1} parent=1 // pred_fallthru
      _
    // Predicated region
    $region46: #{tpu_custom_call.1} parent=1 // pred_check
      _
    $region47: #{tpu_custom_call.1} parent=1 // pred_check_branch
      %85 = sbr.rel (0) target = $region49
    $region48: #{tpu_custom_call.1} parent=1 // pred_region
      _
    $region49: #{tpu_custom_call.1} parent=1 // pred_fallthru
      _
    // Predicated region
    $region50: #{tpu_custom_call.1} parent=1 // pred_check
      _
    $region51: #{tpu_custom_call.1} parent=1 // pred_check_branch
      %87 = sbr.rel (0) target = $region53
    $region52: #{tpu_custom_call.1} parent=1 // pred_region
      _
    $region53: #{tpu_custom_call.1} parent=1 // pred_fallthru
      _
    // Predicated region
    $region54: #{tpu_custom_call.1} parent=1 // pred_check
      _
    $region55: #{tpu_custom_call.1} parent=1 // pred_check_branch
      %89 = sbr.rel (0) target = $region57
    $region56: #{tpu_custom_call.1} parent=1 // pred_region
      %90 = dma.done [#allocation3], 128
    $region57: #{tpu_custom_call.1} parent=1 // pred_fallthru
      _
    // Predicated region
    $region58: #{tpu_custom_call.1} parent=1 // pred_check
      _
    $region59: #{tpu_custom_call.1} parent=1 // pred_check_branch
      %92 = sbr.rel (0) target = $region61
    $region60: #{tpu_custom_call.1} parent=1 // pred_region
      %93 = dma.done [#allocation6], 1024
    $region61: #{tpu_custom_call.1} parent=1 // pred_fallthru
      _
    // Predicated region
    $region62: #{tpu_custom_call.1} parent=1 // pred_check
      _
    $region63: #{tpu_custom_call.1} parent=1 // pred_check_branch
      %95 = sbr.rel (0) target = $region65
    $region64: #{tpu_custom_call.1} parent=1 // pred_region
      %96 = dma.done [#allocation6], 1024
    $region65: #{tpu_custom_call.1} parent=1 // pred_fallthru
      _
    // Predicated region
    $region66: #{tpu_custom_call.1} parent=1 // pred_check
      _
    $region67: #{tpu_custom_call.1} parent=1 // pred_check_branch
      %98 = sbr.rel (0) target = $region69
    $region68: #{tpu_custom_call.1} parent=1 // pred_region
      %99 = dma.done [#allocation9], 1024
    $region69: #{tpu_custom_call.1} parent=1 // pred_fallthru
      _
    %v101 = vld [vmem:[#allocation2] sm:$0xf]
    %v102 = vld [vmem:[#allocation2 + $0x4] sm:$0xf]
    %v103 = vld [vmem:[#allocation5] sm:$0xf]
    %v104 = vld [vmem:[#allocation5 + $0x4] sm:$0xf]
    %v105 = vld [vmem:[#allocation5 + $0x8] sm:$0xf]
    %v106 = vld [vmem:[#allocation5 + $0xc] sm:$0xf]
    %v107 = vld [vmem:[#allocation5 + $0x10] sm:$0xf]
    %v108 = vld [vmem:[#allocation5 + $0x14] sm:$0xf]
    %v109 = vld [vmem:[#allocation5 + $0x18] sm:$0xf]
    %v110 = vld [vmem:[#allocation5 + $0x1c] sm:$0xf]
    %v111 = vld [vmem:[#allocation5 + $0x20] sm:$0xf]
    %v112 = vld [vmem:[#allocation5 + $0x24] sm:$0xf]
    %v113 = vld [vmem:[#allocation5 + $0x28] sm:$0xf]
    %v114 = vld [vmem:[#allocation5 + $0x2c] sm:$0xf]
    %v115 = vld [vmem:[#allocation5 + $0x30] sm:$0xf]
    %v116 = vld [vmem:[#allocation5 + $0x34] sm:$0xf]
    %v117 = vld [vmem:[#allocation5 + $0x38] sm:$0xf]
    %v118 = vld [vmem:[#allocation5 + $0x3c] sm:$0xf]
    %v119 = vld [vmem:[%s2] sm:$0x1]
    %v121 = vlaneseq
    %v122 = vshrl.u32 %v121, 7
    %v123 = vsub.s32 0, %v122
    %v124 = vrot.slane %v119, %v123
    %v128 = vunpack.c.l.b16 %v101
    %v129 = vunpack.c.l.b16 %v102
    %v130 = vpack.c.b16 %v129, %v128
    %v148 = vunpack.c.l.b16 %v103
    %v149 = vunpack.c.l.b16 %v104
    %v150 = vunpack.c.l.b16 %v105
    %v151 = vunpack.c.l.b16 %v106
    %v152 = vunpack.c.l.b16 %v107
    %v153 = vunpack.c.l.b16 %v108
    %v154 = vunpack.c.l.b16 %v109
    %v155 = vunpack.c.l.b16 %v110
    %v156 = vunpack.c.l.b16 %v111
    %v157 = vunpack.c.l.b16 %v112
    %v158 = vunpack.c.l.b16 %v113
    %v159 = vunpack.c.l.b16 %v114
    %v160 = vunpack.c.l.b16 %v115
    %v161 = vunpack.c.l.b16 %v116
    %v162 = vunpack.c.l.b16 %v117
    %v163 = vunpack.c.l.b16 %v118
    %v164 = vpack.c.b16 %v149, %v148
    %v165 = vpack.c.b16 %v151, %v150
    %v166 = vpack.c.b16 %v153, %v152
    %v167 = vpack.c.b16 %v155, %v154
    %v168 = vpack.c.b16 %v157, %v156
    %v169 = vpack.c.b16 %v159, %v158
    %v170 = vpack.c.b16 %v161, %v160
    %v171 = vpack.c.b16 %v163, %v162
    %180 = vmatprep.subr.bf16.mxu0 0
    %181 = vmatpush1.bf16.msra.mxu0 %v171
    %182 = vmatprep.subr.bf16.mxu0 0
    %183 = vmatpush1.bf16.msra.mxu0 %v170
    %184 = vmatprep.subr.bf16.mxu0 0
    %185 = vmatpush1.bf16.msra.mxu0 %v169
    %186 = vmatprep.subr.bf16.mxu0 0
    %187 = vmatpush1.bf16.msra.mxu0 %v168
    %188 = vmatprep.subr.bf16.mxu0 0
    %189 = vmatpush1.bf16.msra.mxu0 %v167
    %190 = vmatprep.subr.bf16.mxu0 0
    %191 = vmatpush1.bf16.msra.mxu0 %v166
    %192 = vmatprep.subr.bf16.mxu0 0
    %193 = vmatpush1.bf16.msra.mxu0 %v165
    %194 = vmatprep.subr.bf16.mxu0 0
    %195 = vmatpush1.bf16.msra.mxu0 %v164
    %196 = vmatprep.subr.bf16.mxu0 0
    %197 = vmatpush2.bf16.msra.mxu0 0
    %198 = vmatprep.subr.bf16.mxu0 0
    %199 = vmatpush2.bf16.msra.mxu0 0
    %200 = vmatprep.subr.bf16.mxu0 0
    %201 = vmatpush2.bf16.msra.mxu0 0
    %202 = vmatprep.subr.bf16.mxu0 0
    %203 = vmatpush2.bf16.msra.mxu0 0
    %204 = vmatprep.subr.bf16.mxu0 0
    %205 = vmatpush2.bf16.msra.mxu0 0
    %206 = vmatprep.subr.bf16.mxu0 0
    %207 = vmatpush2.bf16.msra.mxu0 0
    %208 = vmatprep.subr.bf16.mxu0 0
    %209 = vmatpush2.bf16.msra.mxu0 0
    %210 = vmatprep.subr.bf16.mxu0 0
    %211 = vmatpush2.bf16.msra.mxu0 0
    %212 = vmatprep.mubr.bf16.mxu0 0
    %213 = vmatmul.mubr.bf16.gmra.mxu0 %v130
    %v214 = vpop.f32.mrf.mxu0
    %v215 = vadd.f32 %v124, %v214
    %v216 = vpop.f32.mrf.mxu0
    %v217 = vpop.f32.mrf.mxu0
    %v218 = vadd.f32 %v124, %v217
    %v219 = vpop.f32.mrf.mxu0
    %220 = vdwg.mxu0
    %221 = vadd.xlane.f32.xlu0 %v215
    %v222 = vpop.xlane.xlu0 %221
    %223 = vadd.xlane.f32.xlu0 %v218
    %v224 = vpop.xlane.xlu0 %223
    %v225 = vmul.f32 %v215, %v215
    %v226 = vmul.f32 %v218, %v218
    %227 = vadd.xlane.f32.xlu0 %v225
    %v228 = vpop.xlane.xlu0 %227
    %229 = vadd.xlane.f32.xlu0 %v226
    %v230 = vpop.xlane.xlu0 %229
    %v231 = vmul.f32 %v222, 0.015625
    %v232 = vmul.f32 %v224, 0.015625
    %v233 = vmul.f32 %v228, 0.015625
    %v234 = vmul.f32 %v230, 0.015625
    %v235 = vmul.f32 %v231, %v231
    %v236 = vmul.f32 %v232, %v232
    %v237 = vsub.f32 %v233, %v235
    %v238 = vsub.f32 %v234, %v236
    %v239 = vmax.f32 %v237, 0.0
    %v240 = vmax.f32 %v238, 0.0
    %v241 = vsub.f32 %v215, %v231
    %v242 = vsub.f32 %v218, %v232
    %v243 = vadd.f32 %v239, 1e-05
    %v244 = vadd.f32 %v240, 1e-05
    %v245 = vrsqrt.pop %v243
    %v246 = vrsqrt.pop %v244
    %v247 = vmul.f32 %v241, %v245
    %v248 = vmul.f32 %v242, %v246
    %v249 = vld [vmem:[%s3] sm:$0x1]
    %v251 = vlaneseq
    %v252 = vshrl.u32 %v251, 7
    %v253 = vsub.s32 0, %v252
    %v254 = vrot.slane %v249, %v253
    %v256 = vmul.f32 %v247, %v254
    %v257 = vmul.f32 %v248, %v254
    %v258 = vld [vmem:[%s4] sm:$0x1]
    %v260 = vlaneseq
    %v261 = vshrl.u32 %v260, 7
    %v262 = vsub.s32 0, %v261
    %v263 = vrot.slane %v258, %v262
    %v265 = vadd.f32 %v256, %v263
    %v266 = vadd.f32 %v257, %v263
    %vm267 = vcmp.ge.f32.partialorder %v265, 0.0
    %vm268 = vcmp.ge.f32.partialorder %v266, 0.0
    %v269 = vmul.f32 %v265, 0.2
    %v270 = vmul.f32 %v266, 0.2
    %v271 = vsel %vm267, %v265, %v269
    %v272 = vsel %vm268, %v266, %v270
    %v273 = vpack.c.bf16 %v272, %v271
    %v274 = vld [vmem:[#allocation7] sm:$0xf]
    %v275 = vld [vmem:[#allocation7 + $0x4] sm:$0xf]
    %v276 = vld [vmem:[#allocation7 + $0x8] sm:$0xf]
    %v277 = vld [vmem:[#allocation7 + $0xc] sm:$0xf]
    %v278 = vld [vmem:[#allocation7 + $0x10] sm:$0xf]
    %v279 = vld [vmem:[#allocation7 + $0x14] sm:$0xf]
    %v280 = vld [vmem:[#allocation7 + $0x18] sm:$0xf]
    %v281 = vld [vmem:[#allocation7 + $0x1c] sm:$0xf]
    %v282 = vld [vmem:[#allocation7 + $0x20] sm:$0xf]
    %v283 = vld [vmem:[#allocation7 + $0x24] sm:$0xf]
    %v284 = vld [vmem:[#allocation7 + $0x28] sm:$0xf]
    %v285 = vld [vmem:[#allocation7 + $0x2c] sm:$0xf]
    %v286 = vld [vmem:[#allocation7 + $0x30] sm:$0xf]
    %v287 = vld [vmem:[#allocation7 + $0x34] sm:$0xf]
    %v288 = vld [vmem:[#allocation7 + $0x38] sm:$0xf]
    %v289 = vld [vmem:[#allocation7 + $0x3c] sm:$0xf]
    %v290 = vld [vmem:[%s6] sm:$0x1]
    %v292 = vlaneseq
    %v293 = vshrl.u32 %v292, 7
    %v294 = vsub.s32 0, %v293
    %v295 = vrot.slane %v290, %v294
    %v313 = vunpack.c.l.b16 %v274
    %v314 = vunpack.c.l.b16 %v275
    %v315 = vunpack.c.l.b16 %v276
    %v316 = vunpack.c.l.b16 %v277
    %v317 = vunpack.c.l.b16 %v278
    %v318 = vunpack.c.l.b16 %v279
    %v319 = vunpack.c.l.b16 %v280
    %v320 = vunpack.c.l.b16 %v281
    %v321 = vunpack.c.l.b16 %v282
    %v322 = vunpack.c.l.b16 %v283
    %v323 = vunpack.c.l.b16 %v284
    %v324 = vunpack.c.l.b16 %v285
    %v325 = vunpack.c.l.b16 %v286
    %v326 = vunpack.c.l.b16 %v287
    %v327 = vunpack.c.l.b16 %v288
    %v328 = vunpack.c.l.b16 %v289
    %v329 = vpack.c.b16 %v314, %v313
    %v330 = vpack.c.b16 %v316, %v315
    %v331 = vpack.c.b16 %v318, %v317
    %v332 = vpack.c.b16 %v320, %v319
    %v333 = vpack.c.b16 %v322, %v321
    %v334 = vpack.c.b16 %v324, %v323
    %v335 = vpack.c.b16 %v326, %v325
    %v336 = vpack.c.b16 %v328, %v327
    %345 = vmatprep.subr.bf16.mxu0 0
    %346 = vmatpush1.bf16.msra.mxu0 %v336
    %347 = vmatprep.subr.bf16.mxu0 0
    %348 = vmatpush1.bf16.msra.mxu0 %v335
    %349 = vmatprep.subr.bf16.mxu0 0
    %350 = vmatpush1.bf16.msra.mxu0 %v334
    %351 = vmatprep.subr.bf16.mxu0 0
    %352 = vmatpush1.bf16.msra.mxu0 %v333
    %353 = vmatprep.subr.bf16.mxu0 0
    %354 = vmatpush1.bf16.msra.mxu0 %v332
    %355 = vmatprep.subr.bf16.mxu0 0
    %356 = vmatpush1.bf16.msra.mxu0 %v331
    %357 = vmatprep.subr.bf16.mxu0 0
    %358 = vmatpush1.bf16.msra.mxu0 %v330
    %359 = vmatprep.subr.bf16.mxu0 0
    %360 = vmatpush1.bf16.msra.mxu0 %v329
    %361 = vmatprep.subr.bf16.mxu0 0
    %362 = vmatpush2.bf16.msra.mxu0 0
    %363 = vmatprep.subr.bf16.mxu0 0
    %364 = vmatpush2.bf16.msra.mxu0 0
    %365 = vmatprep.subr.bf16.mxu0 0
    %366 = vmatpush2.bf16.msra.mxu0 0
    %367 = vmatprep.subr.bf16.mxu0 0
    %368 = vmatpush2.bf16.msra.mxu0 0
    %369 = vmatprep.subr.bf16.mxu0 0
    %370 = vmatpush2.bf16.msra.mxu0 0
    %371 = vmatprep.subr.bf16.mxu0 0
    %372 = vmatpush2.bf16.msra.mxu0 0
    %373 = vmatprep.subr.bf16.mxu0 0
    %374 = vmatpush2.bf16.msra.mxu0 0
    %375 = vmatprep.subr.bf16.mxu0 0
    %376 = vmatpush2.bf16.msra.mxu0 0
    %377 = vmatprep.mubr.bf16.mxu0 0
    %378 = vmatmul.mubr.bf16.gmra.mxu0 %v273
    %v379 = vpop.f32.mrf.mxu0
    %v380 = vadd.f32 %v295, %v379
    %v381 = vpop.f32.mrf.mxu0
    %v382 = vpop.f32.mrf.mxu0
    %v383 = vadd.f32 %v295, %v382
    %v384 = vpop.f32.mrf.mxu0
    %385 = vdwg.mxu0
    %386 = vadd.xlane.f32.xlu0 %v380
    %v387 = vpop.xlane.xlu0 %386
    %388 = vadd.xlane.f32.xlu0 %v383
    %v389 = vpop.xlane.xlu0 %388
    %v390 = vmul.f32 %v380, %v380
    %v391 = vmul.f32 %v383, %v383
    %392 = vadd.xlane.f32.xlu0 %v390
    %v393 = vpop.xlane.xlu0 %392
    %394 = vadd.xlane.f32.xlu0 %v391
    %v395 = vpop.xlane.xlu0 %394
    %v396 = vmul.f32 %v387, 0.015625
    %v397 = vmul.f32 %v389, 0.015625
    %v398 = vmul.f32 %v393, 0.015625
    %v399 = vmul.f32 %v395, 0.015625
    %v400 = vmul.f32 %v396, %v396
    %v401 = vmul.f32 %v397, %v397
    %v402 = vsub.f32 %v398, %v400
    %v403 = vsub.f32 %v399, %v401
    %v404 = vmax.f32 %v402, 0.0
    %v405 = vmax.f32 %v403, 0.0
    %v406 = vsub.f32 %v380, %v396
    %v407 = vsub.f32 %v383, %v397
    %v408 = vadd.f32 %v404, 1e-05
    %v409 = vadd.f32 %v405, 1e-05
    %v410 = vrsqrt.pop %v408
    %v411 = vrsqrt.pop %v409
    %v412 = vmul.f32 %v406, %v410
    %v413 = vmul.f32 %v407, %v411
    %v414 = vld [vmem:[%s7] sm:$0x1]
    %v416 = vlaneseq
    %v417 = vshrl.u32 %v416, 7
    %v418 = vsub.s32 0, %v417
    %v419 = vrot.slane %v414, %v418
    %v421 = vmul.f32 %v412, %v419
    %v422 = vmul.f32 %v413, %v419
    %v423 = vld [vmem:[%s8] sm:$0x1]
    %v425 = vlaneseq
    %v426 = vshrl.u32 %v425, 7
    %v427 = vsub.s32 0, %v426
    %v428 = vrot.slane %v423, %v427
    %v430 = vadd.f32 %v421, %v428
    %v431 = vadd.f32 %v422, %v428
    %vm432 = vcmp.ge.f32.partialorder %v430, 0.0
    %vm433 = vcmp.ge.f32.partialorder %v431, 0.0
    %v434 = vmul.f32 %v430, 0.2
    %v435 = vmul.f32 %v431, 0.2
    %v436 = vsel %vm432, %v430, %v434
    %v437 = vsel %vm433, %v431, %v435
    %v438 = vpack.c.bf16 %v437, %v436
    %v439 = vld [vmem:[#allocation8] sm:$0xf]
    %v440 = vld [vmem:[#allocation8 + $0x4] sm:$0xf]
    %v441 = vld [vmem:[#allocation8 + $0x8] sm:$0xf]
    %v442 = vld [vmem:[#allocation8 + $0xc] sm:$0xf]
    %v443 = vld [vmem:[#allocation8 + $0x10] sm:$0xf]
    %v444 = vld [vmem:[#allocation8 + $0x14] sm:$0xf]
    %v445 = vld [vmem:[#allocation8 + $0x18] sm:$0xf]
    %v446 = vld [vmem:[#allocation8 + $0x1c] sm:$0xf]
    %v447 = vld [vmem:[#allocation8 + $0x20] sm:$0xf]
    %v448 = vld [vmem:[#allocation8 + $0x24] sm:$0xf]
    %v449 = vld [vmem:[#allocation8 + $0x28] sm:$0xf]
    %v450 = vld [vmem:[#allocation8 + $0x2c] sm:$0xf]
    %v451 = vld [vmem:[#allocation8 + $0x30] sm:$0xf]
    %v452 = vld [vmem:[#allocation8 + $0x34] sm:$0xf]
    %v453 = vld [vmem:[#allocation8 + $0x38] sm:$0xf]
    %v454 = vld [vmem:[#allocation8 + $0x3c] sm:$0xf]
    %v455 = vld [vmem:[%s10] sm:$0x1]
    %v457 = vlaneseq
    %v458 = vshrl.u32 %v457, 7
    %v459 = vsub.s32 0, %v458
    %v460 = vrot.slane %v455, %v459
    %v478 = vunpack.c.l.b16 %v439
    %v479 = vunpack.c.l.b16 %v440
    %v480 = vunpack.c.l.b16 %v441
    %v481 = vunpack.c.l.b16 %v442
    %v482 = vunpack.c.l.b16 %v443
    %v483 = vunpack.c.l.b16 %v444
    %v484 = vunpack.c.l.b16 %v445
    %v485 = vunpack.c.l.b16 %v446
    %v486 = vunpack.c.l.b16 %v447
    %v487 = vunpack.c.l.b16 %v448
    %v488 = vunpack.c.l.b16 %v449
    %v489 = vunpack.c.l.b16 %v450
    %v490 = vunpack.c.l.b16 %v451
    %v491 = vunpack.c.l.b16 %v452
    %v492 = vunpack.c.l.b16 %v453
    %v493 = vunpack.c.l.b16 %v454
    %v494 = vpack.c.b16 %v479, %v478
    %v495 = vpack.c.b16 %v481, %v480
    %v496 = vpack.c.b16 %v483, %v482
    %v497 = vpack.c.b16 %v485, %v484
    %v498 = vpack.c.b16 %v487, %v486
    %v499 = vpack.c.b16 %v489, %v488
    %v500 = vpack.c.b16 %v491, %v490
    %v501 = vpack.c.b16 %v493, %v492
    %510 = vmatprep.subr.bf16.mxu0 0
    %511 = vmatpush1.bf16.msra.mxu0 %v501
    %512 = vmatprep.subr.bf16.mxu0 0
    %513 = vmatpush1.bf16.msra.mxu0 %v500
    %514 = vmatprep.subr.bf16.mxu0 0
    %515 = vmatpush1.bf16.msra.mxu0 %v499
    %516 = vmatprep.subr.bf16.mxu0 0
    %517 = vmatpush1.bf16.msra.mxu0 %v498
    %518 = vmatprep.subr.bf16.mxu0 0
    %519 = vmatpush1.bf16.msra.mxu0 %v497
    %520 = vmatprep.subr.bf16.mxu0 0
    %521 = vmatpush1.bf16.msra.mxu0 %v496
    %522 = vmatprep.subr.bf16.mxu0 0
    %523 = vmatpush1.bf16.msra.mxu0 %v495
    %524 = vmatprep.subr.bf16.mxu0 0
    %525 = vmatpush1.bf16.msra.mxu0 %v494
    %526 = vmatprep.subr.bf16.mxu0 0
    %527 = vmatpush2.bf16.msra.mxu0 0
    %528 = vmatprep.subr.bf16.mxu0 0
    %529 = vmatpush2.bf16.msra.mxu0 0
    %530 = vmatprep.subr.bf16.mxu0 0
    %531 = vmatpush2.bf16.msra.mxu0 0
    %532 = vmatprep.subr.bf16.mxu0 0
    %533 = vmatpush2.bf16.msra.mxu0 0
    %534 = vmatprep.subr.bf16.mxu0 0
    %535 = vmatpush2.bf16.msra.mxu0 0
    %536 = vmatprep.subr.bf16.mxu0 0
    %537 = vmatpush2.bf16.msra.mxu0 0
    %538 = vmatprep.subr.bf16.mxu0 0
    %539 = vmatpush2.bf16.msra.mxu0 0
    %540 = vmatprep.subr.bf16.mxu0 0
    %541 = vmatpush2.bf16.msra.mxu0 0
    %542 = vmatprep.mubr.bf16.mxu0 0
    %543 = vmatmul.mubr.bf16.gmra.mxu0 %v438
    %v544 = vpop.f32.mrf.mxu0
    %v545 = vadd.f32 %v460, %v544
    %v546 = vpop.f32.mrf.mxu0
    %v547 = vpop.f32.mrf.mxu0
    %v548 = vadd.f32 %v460, %v547
    %v549 = vpop.f32.mrf.mxu0
    %550 = vdwg.mxu0
    %551 = vadd.xlane.f32.xlu0 %v545
    %v552 = vpop.xlane.xlu0 %551
    %553 = vadd.xlane.f32.xlu0 %v548
    %v554 = vpop.xlane.xlu0 %553
    %v555 = vmul.f32 %v545, %v545
    %v556 = vmul.f32 %v548, %v548
    %557 = vadd.xlane.f32.xlu0 %v555
    %v558 = vpop.xlane.xlu0 %557
    %559 = vadd.xlane.f32.xlu0 %v556
    %v560 = vpop.xlane.xlu0 %559
    %v561 = vmul.f32 %v552, 0.0625
    %v562 = vmul.f32 %v554, 0.0625
    %v563 = vmul.f32 %v558, 0.0625
    %v564 = vmul.f32 %v560, 0.0625
    %v565 = vmul.f32 %v561, %v561
    %v566 = vmul.f32 %v562, %v562
    %v567 = vsub.f32 %v563, %v565
    %v568 = vsub.f32 %v564, %v566
    %v569 = vmax.f32 %v567, 0.0
    %v570 = vmax.f32 %v568, 0.0
    %v571 = vsub.f32 %v545, %v561
    %v572 = vsub.f32 %v548, %v562
    %v573 = vadd.f32 %v569, 1e-05
    %v574 = vadd.f32 %v570, 1e-05
    %v575 = vrsqrt.pop %v573
    %v576 = vrsqrt.pop %v574
    %v577 = vmul.f32 %v571, %v575
    %v578 = vmul.f32 %v572, %v576
    %v579 = vld [vmem:[%s11] sm:$0x1]
    %v581 = vlaneseq
    %v582 = vshrl.u32 %v581, 7
    %v583 = vsub.s32 0, %v582
    %v584 = vrot.slane %v579, %v583
    %v586 = vmul.f32 %v577, %v584
    %v587 = vmul.f32 %v578, %v584
    %v588 = vld [vmem:[%s12] sm:$0x1]
    %v590 = vlaneseq
    %v591 = vshrl.u32 %v590, 7
    %v592 = vsub.s32 0, %v591
    %v593 = vrot.slane %v588, %v592
    %v595 = vadd.f32 %v586, %v593
    %v596 = vadd.f32 %v587, %v593
    %vm597 = vcmp.ge.f32.partialorder %v595, 0.0
    %vm598 = vcmp.ge.f32.partialorder %v596, 0.0
    %v599 = vmul.f32 %v595, 0.2
    %v600 = vmul.f32 %v596, 0.2
    %v601 = vsel %vm597, %v595, %v599
    %v602 = vsel %vm598, %v596, %v600
    %603 = vst [vmem:[#allocation10] sm:$0xff] %v601
    %604 = vst [vmem:[#allocation10 + $0x8] sm:$0xff] %v602
    // Predicated region
    $region70: #{tpu_custom_call.1} parent=1 // pred_check
      _
    $region71: #{tpu_custom_call.1} parent=1 // pred_check_branch
      %606 = sbr.rel (0) target = $region73
    $region72: #{tpu_custom_call.1} parent=1 // pred_region
      %s608 = ssub.s32 256, 256
      %609 = vsyncadd [#allocation4], %s608
      %s610 = sshll.u32 [#allocation10], 4
      %s611 = int_to_ptr.vmem [resolvable:$true] %s610
      %616 = dma.vmem_to_hbm [thread:$0]  %s611, 256, %s13, [#allocation4], 128, 128, 8
    $region73: #{tpu_custom_call.1} parent=1 // pred_fallthru
      _
    // Predicated region
    $region74: #{tpu_custom_call.1} parent=1 // pred_check
      _
    $region75: #{tpu_custom_call.1} parent=1 // pred_check_branch
      %618 = sbr.rel (0) target = $region77
    $region76: #{tpu_custom_call.1} parent=1 // pred_region
      %619 = dma.done [#allocation4], 256
    $region77: #{tpu_custom_call.1} parent=1 // pred_fallthru
      _
    %620 = vsyncpa [#allocation3], 1
    %621 = vsyncpa [#allocation6], 1
    %622 = vsyncpa [#allocation9], 1
    %623 = vsyncpa [#allocation4], 1

</llo_original>
